<compile_context>
chip_gen: v6e
topology: v6e:2x2x1
jax: 0.10.0
libtpu: 0.0.40
codegen_flags: <defaults>
</compile_context>

<pallas_src>
import jax
import jax.numpy as jnp
from jax.experimental import pallas as pl
from jax.experimental.pallas import tpu as pltpu


def _round_up(x: int, m: int) -> int:
    return ((x + m - 1) // m) * m


def _linear_sum_kernel(x_ref, w_ref, b_ref, o_ref):
    # x_ref: (TB, K) input dtype   w_ref: (K, N) input dtype
    # b_ref: (1, N) f32            o_ref: (TB, N) input dtype
    y = jnp.dot(x_ref[...], w_ref[...], preferred_element_type=jnp.float32)
    o_ref[...] = (y + b_ref[...]).astype(o_ref.dtype)


def _choose_tb(batch: int, bytes_per_row: int) -> int:
    # Keep one (x tile + out tile) under ~8 MiB so double-buffering stays far
    # inside v7x's 64 MiB physical VMEM (and trivially inside v5e/v6e's 128).
    budget = 8 * 1024 * 1024
    cap = max(8, (budget // max(bytes_per_row, 1)) // 8 * 8)
    cap = min(cap, 1024)
    # Aim for >= 4 grid steps when B allows so the "parallel" grid axis can
    # actually be sharded across v7x's 2 TensorCores.
    target = max(8, _round_up(pl.cdiv(batch, 4), 8))
    return min(cap, target)


def _linear_sum_pallas(x2, w, b_scaled, out_dtype):
    """x2: (B, K), w: (K, N), b_scaled: (1, N) f32 -> (B, N) out_dtype."""
    B, K = x2.shape
    N = w.shape[1]

    # Sublane alignment: pad B up to a multiple of 8 only when needed (the
    # common production case B % 8 == 0 pays nothing).  Output stays (B, N);
    # Pallas masks the tail of the last output block.
    B8 = _round_up(B, 8)
    if B8 != B:
        x2 = jnp.pad(x2, ((0, B8 - B), (0, 0)))

    out_itemsize = jnp.dtype(out_dtype).itemsize
    bytes_per_row = K * x2.dtype.itemsize + N * out_itemsize
    TB = _choose_tb(B8, bytes_per_row)
    grid = (pl.cdiv(B8, TB),)

    flops = 2 * B * K * N + B * N
    bytes_accessed = (
        x2.size * x2.dtype.itemsize
        + w.size * w.dtype.itemsize
        + b_scaled.size * 4
        + B * N * out_itemsize
    )

    return pl.pallas_call(
        _linear_sum_kernel,
        out_shape=jax.ShapeDtypeStruct((B, N), out_dtype),
        grid=grid,
        in_specs=[
            pl.BlockSpec((TB, K), lambda i: (i, 0)),
            pl.BlockSpec((K, N), lambda i: (0, 0)),
            pl.BlockSpec((1, N), lambda i: (0, 0)),
        ],
        out_specs=pl.BlockSpec((TB, N), lambda i: (i, 0)),
        compiler_params=pltpu.CompilerParams(
            dimension_semantics=("parallel",),
        ),
        cost_estimate=pl.CostEstimate(
            flops=flops, transcendentals=0, bytes_accessed=bytes_accessed
        ),
    )(x2, w, b_scaled)


def prepare_params(weight, bias):
    """Once-per-model prep: transpose W to (5, ninp), bias to (1, ninp) f32."""
    weight = jnp.asarray(weight)
    bias = jnp.asarray(bias, jnp.float32)
    n_out, n_in = weight.shape
    w_t = jnp.transpose(weight)          # (5, ninp)
    b_row = bias.reshape(1, n_out)       # (1, ninp) f32
    return w_t, b_row, n_out


def simple_style_encoder_prepared(x, w_t, b_row, ninp):
    """Forward pass using pre-prepared parameters."""
    x = jnp.asarray(x)  # keep incoming dtype (bf16 streams at half the bytes)
    n_in = w_t.shape[0]
    if x.ndim == 2:
        assert x.shape[-1] == n_in
        seq = 1
        x2 = x
    elif x.ndim == 3:
        assert x.shape[-1] == n_in
        seq = x.shape[1]
        x2 = x.reshape(x.shape[0], seq * n_in)   # free: x is contiguous in HBM
    else:
        raise ValueError("x must be 2D or 3D")

    # Sum over S folded into the matmul: stack W.T S times (tiny array; under
    # jit this folds to a constant per S).
    # TODO(synk): for extremely long S (K*4*TB approaching VMEM) add a K grid
    # axis marked "arbitrary" with an f32 accumulator scratch.
    w_stack = w_t if seq == 1 else jnp.tile(w_t, (seq, 1))
    w_stack = w_stack.astype(x.dtype)            # feed the MXU in input dtype
    b_scaled = b_row * jnp.float32(seq)          # bias summed S times

    return _linear_sum_pallas(x2, w_stack, b_scaled, x.dtype)


def simple_style_encoder(x, weight, bias):
    """Convenience wrapper matching the nn.Module signature."""
    w_t, b_row, ninp = prepare_params(weight, bias)
    return simple_style_encoder_prepared(x, w_t, b_row, ninp)


if __name__ == "__main__":
    ninp, B, S, F = 32, 2, 8, 5
    key = jax.random.PRNGKey(0)
    kw, kb, kx2, kx3 = jax.random.split(key, 4)

    # deterministic synthetic parameters (shapes from nn.Linear(5, ninp))
    weight = jax.random.normal(kw, (ninp, F), jnp.float32) * 0.1
    bias = jax.random.normal(kb, (ninp,), jnp.float32) * 0.1

    # params prepared once (transpose hoisted out of the call)
    w_t, b_row, n_out = prepare_params(weight, bias)

    # 2D path: (B, 5) -> (B, ninp)
    x2d = jax.random.normal(kx2, (B, F), jnp.float32)
    out2d = jax.block_until_ready(
        simple_style_encoder_prepared(x2d, w_t, b_row, n_out))
    ref2d = x2d @ weight.T + bias
    assert out2d.shape == (B, ninp)
    assert jnp.allclose(out2d, ref2d, atol=1e-5, rtol=1e-5)

    # 3D path: (B, S, 5) -> (B, ninp)
    x3d = jax.random.normal(kx3, (B, S, F), jnp.float32)
    out3d = jax.block_until_ready(
        simple_style_encoder_prepared(x3d, w_t, b_row, n_out))
    ref3d = (jnp.einsum("bsf,nf->bsn", x3d, weight) + bias).sum(axis=1)
    assert out3d.shape == (B, ninp)
    assert jnp.allclose(out3d, ref3d, atol=1e-4, rtol=1e-4)

    print("KERNEL_OK")
</pallas_src>

<mosaic_0001>
module attributes {stable_mosaic.version = 11 : i64} {
  func.func @_linear_sum_kernel(%arg0: i32, %arg1: memref<8x5xf32, #tpu.memory_space<vmem>>, %arg2: memref<5x32xf32, #tpu.memory_space<vmem>>, %arg3: memref<1x32xf32, #tpu.memory_space<vmem>>, %arg4: memref<8x32xf32, #tpu.memory_space<vmem>>) attributes {dimension_semantics = [#tpu.dimension_semantics<parallel>], iteration_bounds = array<i64: 1>, scalar_prefetch = 0 : i64, scratch_operands = 0 : i64, tpu.core_type = #tpu.core_type<tc>, window_params = [{transform_indices = @transform_0, window_bounds = array<i64: 8, 5>}, {pipeline_mode = #tpu.pipeline_mode<synchronous>, transform_indices = @transform_1, window_bounds = array<i64: 5, 32>}, {pipeline_mode = #tpu.pipeline_mode<synchronous>, transform_indices = @transform_2, window_bounds = array<i64: 1, 32>}, {transform_indices = @transform_3, window_bounds = array<i64: 8, 32>}]} {
    %c0 = arith.constant 0 : index
    %c0_0 = arith.constant 0 : index
    %0 = vector.load %arg1[%c0, %c0_0] : memref<8x5xf32, #tpu.memory_space<vmem>>, vector<8x5xf32>
    %c0_1 = arith.constant 0 : index
    %c0_2 = arith.constant 0 : index
    %1 = vector.load %arg2[%c0_1, %c0_2] : memref<5x32xf32, #tpu.memory_space<vmem>>, vector<5x32xf32>
    %cst = arith.constant dense<0.000000e+00> : vector<8x32xf32>
    %2 = tpu.matmul %0, %1, %cst {dimension_numbers = #tpu.dot_dimension_numbers<[1], [0], [0], [1], [0, 0, 1, 1], [], []>} : vector<8x5xf32>, vector<5x32xf32>, vector<8x32xf32> -> vector<8x32xf32>
    %c0_3 = arith.constant 0 : index
    %c0_4 = arith.constant 0 : index
    %3 = vector.load %arg3[%c0_3, %c0_4] : memref<1x32xf32, #tpu.memory_space<vmem>>, vector<1x32xf32>
    %4 = vector.broadcast %3 : vector<1x32xf32> to vector<8x32xf32>
    %5 = arith.addf %2, %4 : vector<8x32xf32>
    %c0_5 = arith.constant 0 : index
    %c0_6 = arith.constant 0 : index
    %6 = vector.load %arg4[%c0_5, %c0_6] : memref<8x32xf32, #tpu.memory_space<vmem>>, vector<8x32xf32>
    tpu.vector_store %arg4[%c0_5, %c0_6], %5 {strides = array<i32>} : memref<8x32xf32, #tpu.memory_space<vmem>>, vector<8x32xf32>,
    return
  }
  func.func @transform_0(%arg0: i32) -> (i32, i32) {
    %c0_i32 = arith.constant 0 : i32
    %c0_i32_0 = arith.constant 0 : i32
    return %arg0, %c0_i32 : i32, i32
  }
  func.func @transform_1(%arg0: i32) -> (i32, i32) {
    %c0_i32 = arith.constant 0 : i32
    %c0_i32_0 = arith.constant 0 : i32
    %c0_i32_1 = arith.constant 0 : i32
    return %c0_i32, %c0_i32_0 : i32, i32
  }
  func.func @transform_2(%arg0: i32) -> (i32, i32) {
    %c0_i32 = arith.constant 0 : i32
    %c0_i32_0 = arith.constant 0 : i32
    %c0_i32_1 = arith.constant 0 : i32
    return %c0_i32, %c0_i32_0 : i32, i32
  }
  func.func @transform_3(%arg0: i32) -> (i32, i32) {
    %c0_i32 = arith.constant 0 : i32
    %c0_i32_0 = arith.constant 0 : i32
    return %arg0, %c0_i32 : i32, i32
  }
}

</mosaic_0001>

<llo_original>
// kernel: tpu_custom_call.1
$region0: #{tpu_custom_call.1}
  #allocation0 [shape = 'u32[]', space=smem, size = 0x4, offset = 0x4, fixed_abs, tag = 'smem constant byte address 0x4 - core index']
  #allocation1 [shape = 'u32[144,128]{1,0:T(1,128)}', space=vmem, size = 0x12000, scoped, tag = 'internal scratch']
  %s0 = inlined_call_operand.hbm [shape: f32[8,5], index: 0, kind: input, shape index: {}]
  %s1 = inlined_call_operand.hbm [shape: f32[5,32], index: 1, kind: input, shape index: {}]
  %s2 = inlined_call_operand.vmem [shape: f32[1,32], index: 2, kind: input, shape index: {}]
  %s3 = inlined_call_operand.hbm [shape: f32[2,32], index: 3, kind: output, shape index: {}]
  %s4 = sld [smem:[#allocation0]]
  $region30: #{tpu_custom_call.1} parent=0
    _
  %s6 = ssub.s32 1, %s4
  %s7 = scalar_select 0, %s6, %s4
  $region1: #{tpu_custom_call.1} parent=0
    #allocation2 [shape = 'u8[4096]{0}', space=vmem, size = 0x1000, scoped, tag = 'input window, operand 0, single buffered']
    #allocation3 [shape = 's32[1]{0}', space=sflag, size = 0x4, scoped, tag = 'scoped memory for tpu_custom_call.1']
    #allocation4 [shape = 's32[1]{0}', space=sflag, size = 0x4, scoped, tag = 'scoped memory for tpu_custom_call.1']
    #allocation5 [shape = 'u8[4096]{0}', space=vmem, size = 0x1000, scoped, tag = 'input window, operand 1, single buffered']
    #allocation6 [shape = 's32[1]{0}', space=sflag, size = 0x4, scoped, tag = 'scoped memory for tpu_custom_call.1']
    #allocation7 [shape = 'u8[4096]{0}', space=vmem, size = 0x1000, scoped, tag = 'output window, operand 0, single buffered']
    %8 = vsyncpa [#allocation3], 0
    %9 = vsyncpa [#allocation6], 0
    %10 = vsyncpa [#allocation4], 0
    // Predicated region
    $region2: #{tpu_custom_call.1} parent=1 // pred_check
      _
    $region3: #{tpu_custom_call.1} parent=1 // pred_check_branch
      %12 = sbr.rel (0) target = $region5
    $region4: #{tpu_custom_call.1} parent=1 // pred_region
      %s14 = ssub.s32 128, 128
      %15 = vsyncadd [#allocation3], %s14
      %s17 = sshll.u32 [#allocation2], 4
      %s18 = int_to_ptr.vmem [resolvable:$true] %s17
      %20 = dma.hbm_to_vmem [thread:$0]  %s0, 128, %s18, [#allocation3]
    $region5: #{tpu_custom_call.1} parent=1 // pred_fallthru
      _
    // Predicated region
    $region6: #{tpu_custom_call.1} parent=1 // pred_check
      _
    $region7: #{tpu_custom_call.1} parent=1 // pred_check_branch
      %22 = sbr.rel (0) target = $region9
    $region8: #{tpu_custom_call.1} parent=1 // pred_region
      %s24 = ssub.s32 128, 128
      %25 = vsyncadd [#allocation6], %s24
      %s27 = sshll.u32 [#allocation5], 4
      %s28 = int_to_ptr.vmem [resolvable:$true] %s27
      %30 = dma.hbm_to_vmem [thread:$0]  %s1, 128, %s28, [#allocation6]
    $region9: #{tpu_custom_call.1} parent=1 // pred_fallthru
      _
    // Predicated region
    $region10: #{tpu_custom_call.1} parent=1 // pred_check
      _
    $region11: #{tpu_custom_call.1} parent=1 // pred_check_branch
      %32 = sbr.rel (0) target = $region13
    $region12: #{tpu_custom_call.1} parent=1 // pred_region
      _
    $region13: #{tpu_custom_call.1} parent=1 // pred_fallthru
      _
    // Predicated region
    $region14: #{tpu_custom_call.1} parent=1 // pred_check
      _
    $region15: #{tpu_custom_call.1} parent=1 // pred_check_branch
      %34 = sbr.rel (0) target = $region17
    $region16: #{tpu_custom_call.1} parent=1 // pred_region
      %35 = dma.done [#allocation3], 128
    $region17: #{tpu_custom_call.1} parent=1 // pred_fallthru
      _
    // Predicated region
    $region18: #{tpu_custom_call.1} parent=1 // pred_check
      _
    $region19: #{tpu_custom_call.1} parent=1 // pred_check_branch
      %37 = sbr.rel (0) target = $region21
    $region20: #{tpu_custom_call.1} parent=1 // pred_region
      %38 = dma.done [#allocation6], 128
    $region21: #{tpu_custom_call.1} parent=1 // pred_fallthru
      _
    %v39 = vld [vmem:[#allocation2] sm:$0xff]
    %v40 = vld [vmem:[#allocation5] sm:$0x1f]
    %v41 = vld [vmem:[%s2] sm:$0x1]
    %v43 = vlaneseq
    %v44 = vshrl.u32 %v43, 7
    %v45 = vsub.s32 0, %v44
    %v46 = vrot.slane %v41, %v45
    %vm48 = vcmask 39936
    %v50 = vsel %vm48, %v39, 0
    %vm52 = vcmask 1044480
    %v54 = vsel %vm52, %v40, 0
    %56 = vmatprep.subr.mxu0 0.0
    %57 = vmatpush1.msra.mxu0 0.0
    %58 = vmatprep.subr.mxu0 0.0
    %59 = vmatpush1.msra.mxu0 0.0
    %60 = vmatprep.subr.mxu0 0.0
    %61 = vmatpush1.msra.mxu0 0.0
    %62 = vmatprep.subr.mxu0 0.0
    %63 = vmatpush1.msra.mxu0 0.0
    %64 = vmatprep.subr.mxu0 0.0
    %65 = vmatpush1.msra.mxu0 0.0
    %66 = vmatprep.subr.mxu0 0.0
    %67 = vmatpush1.msra.mxu0 0.0
    %68 = vmatprep.subr.mxu0 0.0
    %69 = vmatpush1.msra.mxu0 0.0
    %70 = vmatprep.subr.mxu0 0.0
    %71 = vmatpush1.msra.mxu0 0.0
    %72 = vmatprep.subr.mxu0 0.0
    %73 = vmatpush1.msra.mxu0 0.0
    %74 = vmatprep.subr.mxu0 0.0
    %75 = vmatpush1.msra.mxu0 0.0
    %76 = vmatprep.subr.mxu0 0.0
    %77 = vmatpush1.msra.mxu0 0.0
    %78 = vmatprep.subr.mxu0 0.0
    %79 = vmatpush1.msra.mxu0 0.0
    %80 = vmatprep.subr.mxu0 0.0
    %81 = vmatpush1.msra.mxu0 0.0
    %82 = vmatprep.subr.mxu0 0.0
    %83 = vmatpush1.msra.mxu0 0.0
    %84 = vmatprep.subr.mxu0 0.0
    %85 = vmatpush1.msra.mxu0 0.0
    %86 = vmatprep.subr.mxu0 0.0
    %87 = vmatpush1.msra.mxu0 %v54
    %88 = vmatprep.subr.mxu0 0.0
    %89 = vmatpush2.msra.mxu0 0.0
    %90 = vmatprep.subr.mxu0 0.0
    %91 = vmatpush2.msra.mxu0 0.0
    %92 = vmatprep.subr.mxu0 0.0
    %93 = vmatpush2.msra.mxu0 0.0
    %94 = vmatprep.subr.mxu0 0.0
    %95 = vmatpush2.msra.mxu0 0.0
    %96 = vmatprep.subr.mxu0 0.0
    %97 = vmatpush2.msra.mxu0 0.0
    %98 = vmatprep.subr.mxu0 0.0
    %99 = vmatpush2.msra.mxu0 0.0
    %100 = vmatprep.subr.mxu0 0.0
    %101 = vmatpush2.msra.mxu0 0.0
    %102 = vmatprep.subr.mxu0 0.0
    %103 = vmatpush2.msra.mxu0 0.0
    %104 = vmatprep.subr.mxu0 0.0
    %105 = vmatpush2.msra.mxu0 0.0
    %106 = vmatprep.subr.mxu0 0.0
    %107 = vmatpush2.msra.mxu0 0.0
    %108 = vmatprep.subr.mxu0 0.0
    %109 = vmatpush2.msra.mxu0 0.0
    %110 = vmatprep.subr.mxu0 0.0
    %111 = vmatpush2.msra.mxu0 0.0
    %112 = vmatprep.subr.mxu0 0.0
    %113 = vmatpush2.msra.mxu0 0.0
    %114 = vmatprep.subr.mxu0 0.0
    %115 = vmatpush2.msra.mxu0 0.0
    %116 = vmatprep.subr.mxu0 0.0
    %117 = vmatpush2.msra.mxu0 0.0
    %118 = vmatprep.subr.mxu0 0.0
    %119 = vmatpush2.msra.mxu0 0.0
    %120 = vmatprep.mubr.f32.mxu0 0.0
    %121 = vmatmul.mubr.f32.gmra.mxu0 %v50
    %v122 = vpop.f32.mrf.mxu0
    %v123 = vadd.f32 %v46, %v122
    %v124 = vpop.f32.mrf.mxu0
    %125 = vdwg.mxu0
    %vm126 = vcmask 261120
    %127 = vst.msk [vmem:[#allocation7] sm:$0xff] %vm126, %v123
    // Predicated region
    $region22: #{tpu_custom_call.1} parent=1 // pred_check
      _
    $region23: #{tpu_custom_call.1} parent=1 // pred_check_branch
      %129 = sbr.rel (0) target = $region25
    $region24: #{tpu_custom_call.1} parent=1 // pred_region
      %s131 = ssub.s32 128, 32
      %132 = vsyncadd [#allocation4], %s131
      %s133 = sshll.u32 [#allocation7], 4
      %s134 = int_to_ptr.vmem [resolvable:$true] %s133
      %139 = dma.vmem_to_hbm [thread:$0]  %s134, 32, %s3, [#allocation4], 32, 32, 2
    $region25: #{tpu_custom_call.1} parent=1 // pred_fallthru
      _
    // Predicated region
    $region26: #{tpu_custom_call.1} parent=1 // pred_check
      _
    $region27: #{tpu_custom_call.1} parent=1 // pred_check_branch
      %141 = sbr.rel (0) target = $region29
    $region28: #{tpu_custom_call.1} parent=1 // pred_region
      %142 = dma.done [#allocation4], 128
    $region29: #{tpu_custom_call.1} parent=1 // pred_fallthru
      _
    %143 = vsyncpa [#allocation3], 1
    %144 = vsyncpa [#allocation6], 1
    %145 = vsyncpa [#allocation4], 1

</llo_original>
